<compile_context>
chip_gen: v7x
topology: tpu7x:2x2x1
jax: 0.10.0
libtpu: 0.0.40
codegen_flags: <defaults>
</compile_context>

<pallas_src>
import jax
import jax.numpy as jnp
from jax.experimental import pallas as pl
from jax.experimental.pallas import tpu as pltpu


# ----------------------------------------------------------------------------
# Model / padding configuration
# ----------------------------------------------------------------------------
VOCAB_IN_ENC = 11      # encoder vocab_input_size
VOCAB_IN_DEC = 13      # decoder vocab_input_size (== vocab_output_size)
VOCAB_OUT = 13
EMB = 16
HIDDEN = 32
NUM_LAYERS = 2
BATCH = 2
SRC_LEN = 8
TGT_LEN = 6

_LANE = 128

B_PAD = 8                                   # batch -> one sublane tile
X_WIN = HIDDEN                              # per-layer x lane window (EMB<=32)
K_CAT = X_WIN + HIDDEN                      # fused [x | h] contraction = 64
G_ALL = 4 * HIDDEN                          # all 4 gates in one lane group=128
V_PAD = _LANE                               # vocab_out padded -> lane-dense st
V_TOTAL = VOCAB_IN_ENC + VOCAB_IN_DEC       # combined embedding table rows

assert EMB <= X_WIN, "x lane window must hold the embedding"


# ----------------------------------------------------------------------------
# Fused encoder+decoder Pallas kernel (one grid step == one time step)
# ----------------------------------------------------------------------------
def make_seq2seq_kernel(src_len, num_layers, hidden, batch):
    def kernel(tok_ref, emb_ref, wcat_ref, bias_ref, fcw_ref, fcb_ref,
               out_ref, x_scr, h_scr, c_scr):
        t = pl.program_id(0)
        is_dec = t >= src_len

        @pl.when(t == 0)
        def _init():
            # Zero recurrent state (PyTorch LSTM default hx), the padding rows
            # of the x staging buffer, and the t=0 "SOS" row of the output.
            x_scr[...] = jnp.zeros_like(x_scr)
            h_scr[...] = jnp.zeros_like(h_scr)
            c_scr[...] = jnp.zeros_like(c_scr)
            out_ref[...] = jnp.zeros_like(out_ref)

        # ---- in-kernel embedding gather (combined enc+dec table) -----------
        # Decoder token ids were offset by VOCAB_IN_ENC on the host, so one
        # VMEM-resident table serves both phases.  batch is tiny and static.
        for bb in range(batch):
            x_scr[pl.ds(bb, 1), :] = emb_ref[tok_ref[t, bb]]        # (1, X_WIN)

        # ---- stacked LSTM cells (shared by encoder and decoder phases) -----
        base = jnp.where(is_dec, num_layers, 0)     # weight-stack row offset
        x = x_scr[...]                               # (B_PAD, X_WIN)
        for layer in range(num_layers):              # static unroll
            w = wcat_ref[base + layer]               # (K_CAT, 4H)  VMEM-resident
            b = bias_ref[base + layer]               # (1, 4H)
            h = h_scr[layer]
            c = c_scr[layer]
            xh = jnp.concatenate([x, h], axis=-1)    # (B_PAD, K_CAT)
            gates = jnp.dot(xh, w, preferred_element_type=jnp.float32) + b
            i_g = jax.nn.sigmoid(gates[:, 0 * hidden:1 * hidden])
            f_g = jax.nn.sigmoid(gates[:, 1 * hidden:2 * hidden])
            g_g = jnp.tanh(gates[:, 2 * hidden:3 * hidden])
            o_g = jax.nn.sigmoid(gates[:, 3 * hidden:4 * hidden])
            c_new = f_g * c + i_g * g_g
            h_new = o_g * jnp.tanh(c_new)
            h_scr[layer] = h_new
            c_scr[layer] = c_new
            x = h_new

        # ---- decoder-only fc projection, lane-dense store to output --------
        @pl.when(is_dec)
        def _emit():
            out_ref[...] = (
                jnp.dot(x, fcw_ref[...], preferred_element_type=jnp.float32)
                + fcb_ref[...])

    return kernel


def seq2seq_fused(tokens, emb, w_cat, bias, fc_w, fc_b,
                  *, src_len, tgt_len, num_layers, hidden, batch):
    """tokens: (src_len + tgt_len - 1, batch) int32 -> (tgt_len, B_PAD, V_PAD)."""
    total_steps = tokens.shape[0]
    v_total, _, x_win = emb.shape
    _, k_cat, g_all = w_cat.shape
    v_pad = fc_w.shape[1]

    grid_spec = pltpu.PrefetchScalarGridSpec(
        num_scalar_prefetch=1,                       # tokens -> SMEM
        grid=(total_steps,),
        in_specs=[
            # Constant index_maps: every table/weight is DMA'd HBM->VMEM once
            # and stays resident across all time steps.
            pl.BlockSpec((v_total, 1, x_win), lambda t, tok: (0, 0, 0)),   # emb
            pl.BlockSpec((2 * num_layers, k_cat, g_all),
                         lambda t, tok: (0, 0, 0)),                        # w_cat
            pl.BlockSpec((2 * num_layers, 1, g_all),
                         lambda t, tok: (0, 0, 0)),                        # bias
            pl.BlockSpec((hidden, v_pad), lambda t, tok: (0, 0)),          # fc_w
            pl.BlockSpec((1, v_pad), lambda t, tok: (0, 0)),               # fc_b
        ],
        # Row 0 of the output is the PyTorch zeros row (written at t == 0);
        # decoder step t writes row (t - src_len + 1) directly.
        out_specs=pl.BlockSpec(
            (None, B_PAD, v_pad),
            lambda t, tok: (jnp.maximum(t - src_len + 1, 0), 0, 0)),
        scratch_shapes=[
            pltpu.VMEM((B_PAD, x_win), jnp.float32),               # x staging
            pltpu.VMEM((num_layers, B_PAD, hidden), jnp.float32),  # h state
            pltpu.VMEM((num_layers, B_PAD, hidden), jnp.float32),  # c state
        ],
    )
    return pl.pallas_call(
        make_seq2seq_kernel(src_len, num_layers, hidden, batch),
        out_shape=jax.ShapeDtypeStruct((tgt_len, B_PAD, v_pad), jnp.float32),
        grid_spec=grid_spec,
        compiler_params=pltpu.CompilerParams(
            dimension_semantics=("arbitrary",)),     # serial time recurrence
    )(tokens, emb, w_cat, bias, fc_w, fc_b)


# ----------------------------------------------------------------------------
# Parameter construction (PyTorch-convention raw params) + TPU packing
# ----------------------------------------------------------------------------
def _uniform(key, shape, scale):
    return jax.random.uniform(key, shape, jnp.float32, -scale, scale)


def init_lstm_stack_raw(key, input_size, hidden_size, num_layers):
    layers = []
    scale = hidden_size ** -0.5
    for layer in range(num_layers):
        in_sz = input_size if layer == 0 else hidden_size
        key, k1, k2, k3, k4 = jax.random.split(key, 5)
        layers.append(dict(
            w_ih=_uniform(k1, (4 * hidden_size, in_sz), scale),
            w_hh=_uniform(k2, (4 * hidden_size, hidden_size), scale),
            b_ih=_uniform(k3, (4 * hidden_size,), scale),
            b_hh=_uniform(k4, (4 * hidden_size,), scale)))
    return layers, key


def init_raw_params(key):
    key, k_e = jax.random.split(key)
    enc_emb = jax.random.normal(k_e, (VOCAB_IN_ENC, EMB), jnp.float32)
    enc_layers, key = init_lstm_stack_raw(key, EMB, HIDDEN, NUM_LAYERS)

    key, k_d = jax.random.split(key)
    dec_emb = jax.random.normal(k_d, (VOCAB_IN_DEC, EMB), jnp.float32)
    dec_layers, key = init_lstm_stack_raw(key, EMB, HIDDEN, NUM_LAYERS)

    key, k_w, k_b = jax.random.split(key, 3)
    scale = HIDDEN ** -0.5
    fc_w = _uniform(k_w, (VOCAB_OUT, HIDDEN), scale)
    fc_b = _uniform(k_b, (VOCAB_OUT,), scale)
    return dict(enc=dict(emb=enc_emb, layers=enc_layers),
                dec=dict(emb=dec_emb, layers=dec_layers, fc_w=fc_w, fc_b=fc_b))


def pack_lstm_stack(layers, x_win, hidden):
    """Pre-transpose + fuse per-layer weights: gates = [x | h] @ w_cat + b.

    K layout: w_ih rows at offsets [0, in_size) of the x window (rest zero),
    w_hh rows at [x_win, x_win + hidden).  Gate columns keep PyTorch order
    (i, f, g, o), `hidden` lanes each (4*hidden == one 128-lane group here).
    """
    w_cats, biases = [], []
    for p in layers:
        in_sz = p['w_ih'].shape[1]
        w_x = jnp.zeros((x_win, 4 * hidden), jnp.float32).at[:in_sz].set(p['w_ih'].T)
        w_cat = jnp.concatenate([w_x, p['w_hh'].T], axis=0)      # (x_win+h, 4h)
        b = (p['b_ih'] + p['b_hh']).reshape(1, -1)                # (1, 4h)
        w_cats.append(w_cat)
        biases.append(b)
    return jnp.stack(w_cats), jnp.stack(biases)


def pack_params(raw):
    # Combined embedding table (encoder rows first, decoder rows after); rows
    # padded to X_WIN lanes with zeros (zero lanes hit zero weight rows).
    enc_emb = jnp.pad(raw['enc']['emb'], ((0, 0), (0, X_WIN - EMB)))
    dec_emb = jnp.pad(raw['dec']['emb'], ((0, 0), (0, X_WIN - EMB)))
    emb = jnp.concatenate([enc_emb, dec_emb], axis=0).reshape(V_TOTAL, 1, X_WIN)

    enc_wcat, enc_b = pack_lstm_stack(raw['enc']['layers'], X_WIN, HIDDEN)
    dec_wcat, dec_b = pack_lstm_stack(raw['dec']['layers'], X_WIN, HIDDEN)
    w_cat = jnp.concatenate([enc_wcat, dec_wcat], axis=0)    # (2L, K_CAT, 4H)
    bias = jnp.concatenate([enc_b, dec_b], axis=0)           # (2L, 1, 4H)

    fc_w = jnp.pad(raw['dec']['fc_w'].T,
                   ((0, 0), (0, V_PAD - VOCAB_OUT)))          # (HIDDEN, V_PAD)
    fc_b = jnp.pad(raw['dec']['fc_b'].reshape(1, -1),
                   ((0, 0), (0, V_PAD - VOCAB_OUT)))          # (1, V_PAD)
    return dict(emb=emb, w_cat=w_cat, bias=bias, fc_w=fc_w, fc_b=fc_b)


# ----------------------------------------------------------------------------
# Seq2Seq training-mode forward
# ----------------------------------------------------------------------------
@jax.jit
def seq2seq_forward(packed, source, target):
    """Returns (target_len, batch, vocab_out); row 0 is zeros (as in PyTorch)."""
    src_len, batch = source.shape
    tgt_len = target.shape[0]
    # Teacher forcing ratio fixed at 1.0: decoder inputs are target[:-1].
    dec_tokens = target[:-1] + VOCAB_IN_ENC       # offset into combined table
    tokens = jnp.concatenate([source, dec_tokens], axis=0).astype(jnp.int32)
    logits_pad = seq2seq_fused(
        tokens, packed['emb'], packed['w_cat'], packed['bias'],
        packed['fc_w'], packed['fc_b'],
        src_len=src_len, tgt_len=tgt_len,
        num_layers=NUM_LAYERS, hidden=HIDDEN, batch=batch)
    return logits_pad[:, :batch, :VOCAB_OUT]


# ----------------------------------------------------------------------------
# Pure-JAX reference (unpadded, per-step) for correctness check
# ----------------------------------------------------------------------------
def _lstm_cell_ref(x, h, c, p):
    gates = x @ p['w_ih'].T + h @ p['w_hh'].T + p['b_ih'] + p['b_hh']
    hid = h.shape[-1]
    i_g = jax.nn.sigmoid(gates[:, 0 * hid:1 * hid])
    f_g = jax.nn.sigmoid(gates[:, 1 * hid:2 * hid])
    g_g = jnp.tanh(gates[:, 2 * hid:3 * hid])
    o_g = jax.nn.sigmoid(gates[:, 3 * hid:4 * hid])
    c_new = f_g * c + i_g * g_g
    return o_g * jnp.tanh(c_new), c_new


def seq2seq_reference(raw, source, target):
    src_len, batch = source.shape
    tgt_len = target.shape[0]
    h = [jnp.zeros((batch, HIDDEN), jnp.float32) for _ in range(NUM_LAYERS)]
    c = [jnp.zeros((batch, HIDDEN), jnp.float32) for _ in range(NUM_LAYERS)]
    emb = jnp.take(raw['enc']['emb'], source, axis=0)
    for t in range(src_len):
        x = emb[t]
        for l, p in enumerate(raw['enc']['layers']):
            h[l], c[l] = _lstm_cell_ref(x, h[l], c[l], p)
            x = h[l]
    outputs = [jnp.zeros((batch, VOCAB_OUT), jnp.float32)]
    word = target[0]
    for t in range(1, tgt_len):
        x = jnp.take(raw['dec']['emb'], word, axis=0)
        for l, p in enumerate(raw['dec']['layers']):
            h[l], c[l] = _lstm_cell_ref(x, h[l], c[l], p)
            x = h[l]
        outputs.append(x @ raw['dec']['fc_w'].T + raw['dec']['fc_b'])
        word = target[t]  # teacher forcing ratio 1.0
    return jnp.stack(outputs)


# ----------------------------------------------------------------------------
# Main
# ----------------------------------------------------------------------------
if __name__ == "__main__":
    key = jax.random.PRNGKey(0)
    key, k_params, k_src, k_tgt = jax.random.split(key, 4)

    raw = init_raw_params(k_params)
    packed = pack_params(raw)

    source = jax.random.randint(k_src, (SRC_LEN, BATCH), 0, VOCAB_IN_ENC,
                                dtype=jnp.int32)
    target = jax.random.randint(k_tgt, (TGT_LEN, BATCH), 0, VOCAB_IN_DEC,
                                dtype=jnp.int32)

    out = seq2seq_forward(packed, source, target)
    out = jax.block_until_ready(out)

    assert out.shape == (TGT_LEN, BATCH, VOCAB_OUT), out.shape
    assert out.dtype == jnp.float32

    ref = seq2seq_reference(raw, source, target)
    max_err = float(jnp.max(jnp.abs(out - ref)))
    assert max_err < 1e-3, f"Pallas vs reference mismatch: max_err={max_err}"

    print("KERNEL_OK")
</pallas_src>

<mosaic_0001>
module attributes {stable_mosaic.version = 11 : i64} {
  func.func @kernel(%arg0: i32, %arg1: memref<13x2xi32, #tpu.memory_space<smem>>, %arg2: memref<24x1x32xf32, #tpu.memory_space<vmem>>, %arg3: memref<4x64x128xf32, #tpu.memory_space<vmem>>, %arg4: memref<4x1x128xf32, #tpu.memory_space<vmem>>, %arg5: memref<32x128xf32, #tpu.memory_space<vmem>>, %arg6: memref<1x128xf32, #tpu.memory_space<vmem>>, %arg7: memref<1x8x128xf32, #tpu.memory_space<vmem>>, %arg8: memref<8x32xf32, #tpu.memory_space<vmem>>, %arg9: memref<2x8x32xf32, #tpu.memory_space<vmem>>, %arg10: memref<2x8x32xf32, #tpu.memory_space<vmem>>) attributes {dimension_semantics = [#tpu.dimension_semantics<arbitrary>], iteration_bounds = array<i64: 13>, scalar_prefetch = 1 : i64, scratch_operands = 3 : i64, tpu.core_type = #tpu.core_type<tc>, window_params = [{pipeline_mode = #tpu.pipeline_mode<synchronous>, transform_indices = @transform_0, window_bounds = array<i64: 24, 1, 32>}, {pipeline_mode = #tpu.pipeline_mode<synchronous>, transform_indices = @transform_1, window_bounds = array<i64: 4, 64, 128>}, {pipeline_mode = #tpu.pipeline_mode<synchronous>, transform_indices = @transform_2, window_bounds = array<i64: 4, 1, 128>}, {pipeline_mode = #tpu.pipeline_mode<synchronous>, transform_indices = @transform_3, window_bounds = array<i64: 32, 128>}, {pipeline_mode = #tpu.pipeline_mode<synchronous>, transform_indices = @transform_4, window_bounds = array<i64: 1, 128>}, {transform_indices = @transform_5, window_bounds = array<i64: 1, 8, 128>}]} {
    %c8_i32 = arith.constant 8 : i32
    %0 = arith.cmpi sge, %arg0, %c8_i32 : i32
    %c0_i32 = arith.constant 0 : i32
    %1 = arith.cmpi eq, %arg0, %c0_i32 : i32
    %2 = arith.extui %1 : i1 to i32
    %c0_i32_0 = arith.constant 0 : i32
    %3 = arith.cmpi ne, %2, %c0_i32_0 : i32
    scf.if %3 {
      %cst_55 = arith.constant 0.000000e+00 : f32
      %114 = vector.broadcast %cst_55 : f32 to vector<8x32xf32>
      %c0_56 = arith.constant 0 : index
      %c0_57 = arith.constant 0 : index
      %115 = vector.load %arg8[%c0_56, %c0_57] : memref<8x32xf32, #tpu.memory_space<vmem>>, vector<8x32xf32>
      tpu.vector_store %arg8[%c0_56, %c0_57], %114 {strides = array<i32>} : memref<8x32xf32, #tpu.memory_space<vmem>>, vector<8x32xf32>,
      %cst_58 = arith.constant 0.000000e+00 : f32
      %116 = vector.broadcast %cst_58 : f32 to vector<2x8x32xf32>
      %c0_59 = arith.constant 0 : index
      %c0_60 = arith.constant 0 : index
      %c0_61 = arith.constant 0 : index
      %117 = vector.load %arg9[%c0_59, %c0_60, %c0_61] : memref<2x8x32xf32, #tpu.memory_space<vmem>>, vector<2x8x32xf32>
      tpu.vector_store %arg9[%c0_59, %c0_60, %c0_61], %116 {strides = array<i32>} : memref<2x8x32xf32, #tpu.memory_space<vmem>>, vector<2x8x32xf32>,
      %cst_62 = arith.constant 0.000000e+00 : f32
      %118 = vector.broadcast %cst_62 : f32 to vector<2x8x32xf32>
      %c0_63 = arith.constant 0 : index
      %c0_64 = arith.constant 0 : index
      %c0_65 = arith.constant 0 : index
      %119 = vector.load %arg10[%c0_63, %c0_64, %c0_65] : memref<2x8x32xf32, #tpu.memory_space<vmem>>, vector<2x8x32xf32>
      tpu.vector_store %arg10[%c0_63, %c0_64, %c0_65], %118 {strides = array<i32>} : memref<2x8x32xf32, #tpu.memory_space<vmem>>, vector<2x8x32xf32>,
      %cst_66 = arith.constant 0.000000e+00 : f32
      %120 = vector.broadcast %cst_66 : f32 to vector<8x128xf32>
      %c0_67 = arith.constant 0 : index
      %c0_68 = arith.constant 0 : index
      %c0_69 = arith.constant 0 : index
      %121 = vector.load %arg7[%c0_67, %c0_68, %c0_69] : memref<1x8x128xf32, #tpu.memory_space<vmem>>, vector<1x8x128xf32>
      %122 = vector.shape_cast %121 : vector<1x8x128xf32> to vector<8x128xf32>
      %123 = vector.shape_cast %120 : vector<8x128xf32> to vector<1x8x128xf32>
      tpu.vector_store %arg7[%c0_67, %c0_68, %c0_69], %123 {strides = array<i32>} : memref<1x8x128xf32, #tpu.memory_space<vmem>>, vector<1x8x128xf32>,
    } else {
    }
    %4 = arith.index_cast %arg0 : i32 to index
    %c0 = arith.constant 0 : index
    %5 = memref.load %arg1[%4, %c0] : memref<13x2xi32, #tpu.memory_space<smem>>
    %6 = arith.index_cast %5 : i32 to index
    %c0_1 = arith.constant 0 : index
    %c0_2 = arith.constant 0 : index
    %7 = vector.load %arg2[%6, %c0_1, %c0_2] : memref<24x1x32xf32, #tpu.memory_space<vmem>>, vector<1x1x32xf32>
    %8 = vector.shape_cast %7 : vector<1x1x32xf32> to vector<1x32xf32>
    %c0_3 = arith.constant 0 : index
    %c0_4 = arith.constant 0 : index
    %9 = vector.load %arg8[%c0_3, %c0_4] : memref<8x32xf32, #tpu.memory_space<vmem>>, vector<1x32xf32>
    tpu.vector_store %arg8[%c0_3, %c0_4], %8 {strides = array<i32>} : memref<8x32xf32, #tpu.memory_space<vmem>>, vector<1x32xf32>,
    %10 = arith.index_cast %arg0 : i32 to index
    %c1 = arith.constant 1 : index
    %11 = memref.load %arg1[%10, %c1] : memref<13x2xi32, #tpu.memory_space<smem>>
    %12 = arith.index_cast %11 : i32 to index
    %c0_5 = arith.constant 0 : index
    %c0_6 = arith.constant 0 : index
    %13 = vector.load %arg2[%12, %c0_5, %c0_6] : memref<24x1x32xf32, #tpu.memory_space<vmem>>, vector<1x1x32xf32>
    %14 = vector.shape_cast %13 : vector<1x1x32xf32> to vector<1x32xf32>
    %c1_7 = arith.constant 1 : index
    %c0_8 = arith.constant 0 : index
    %15 = vector.load %arg8[%c1_7, %c0_8] : memref<8x32xf32, #tpu.memory_space<vmem>>, vector<1x32xf32>
    tpu.vector_store %arg8[%c1_7, %c0_8], %14 {strides = array<i32>} : memref<8x32xf32, #tpu.memory_space<vmem>>, vector<1x32xf32>,
    %c2_i32 = arith.constant 2 : i32
    %c0_i32_9 = arith.constant 0 : i32
    %16 = arith.select %0, %c2_i32, %c0_i32_9 : i32
    %c0_10 = arith.constant 0 : index
    %c0_11 = arith.constant 0 : index
    %17 = vector.load %arg8[%c0_10, %c0_11] : memref<8x32xf32, #tpu.memory_space<vmem>>, vector<8x32xf32>
    %c0_i32_12 = arith.constant 0 : i32
    %18 = arith.addi %16, %c0_i32_12 : i32
    %19 = arith.index_cast %18 : i32 to index
    %c0_13 = arith.constant 0 : index
    %c0_14 = arith.constant 0 : index
    %20 = vector.load %arg3[%19, %c0_13, %c0_14] : memref<4x64x128xf32, #tpu.memory_space<vmem>>, vector<1x64x128xf32>
    %21 = vector.shape_cast %20 : vector<1x64x128xf32> to vector<64x128xf32>
    %c0_i32_15 = arith.constant 0 : i32
    %22 = arith.addi %16, %c0_i32_15 : i32
    %23 = arith.index_cast %22 : i32 to index
    %c0_16 = arith.constant 0 : index
    %c0_17 = arith.constant 0 : index
    %24 = vector.load %arg4[%23, %c0_16, %c0_17] : memref<4x1x128xf32, #tpu.memory_space<vmem>>, vector<1x1x128xf32>
    %25 = vector.shape_cast %24 : vector<1x1x128xf32> to vector<1x128xf32>
    %c0_18 = arith.constant 0 : index
    %c0_19 = arith.constant 0 : index
    %c0_20 = arith.constant 0 : index
    %26 = vector.load %arg9[%c0_18, %c0_19, %c0_20] : memref<2x8x32xf32, #tpu.memory_space<vmem>>, vector<1x8x32xf32>
    %27 = vector.shape_cast %26 : vector<1x8x32xf32> to vector<8x32xf32>
    %c0_21 = arith.constant 0 : index
    %c0_22 = arith.constant 0 : index
    %c0_23 = arith.constant 0 : index
    %28 = vector.load %arg10[%c0_21, %c0_22, %c0_23] : memref<2x8x32xf32, #tpu.memory_space<vmem>>, vector<1x8x32xf32>
    %29 = vector.shape_cast %28 : vector<1x8x32xf32> to vector<8x32xf32>
    %30 = tpu.concatenate %17, %27 in 1 : vector<8x32xf32>, vector<8x32xf32> -> vector<8x64xf32>
    %cst = arith.constant dense<0.000000e+00> : vector<8x128xf32>
    %31 = tpu.matmul %30, %21, %cst {dimension_numbers = #tpu.dot_dimension_numbers<[1], [0], [0], [1], [0, 0, 1, 1], [], []>} : vector<8x64xf32>, vector<64x128xf32>, vector<8x128xf32> -> vector<8x128xf32>
    %32 = vector.broadcast %25 : vector<1x128xf32> to vector<8x128xf32>
    %33 = arith.addf %31, %32 : vector<8x128xf32>
    %34 = vector.extract_strided_slice %33 {offsets = [0, 0], sizes = [8, 32], strides = [1, 1]} : vector<8x128xf32> to vector<8x32xf32>
    %35 = arith.negf %34 : vector<8x32xf32>
    %36 = math.exp %35 : vector<8x32xf32>
    %cst_24 = arith.constant 1.000000e+00 : f32
    %37 = vector.broadcast %cst_24 : f32 to vector<8x32xf32>
    %38 = arith.addf %37, %36 : vector<8x32xf32>
    %39 = arith.divf %37, %38 : vector<8x32xf32>
    %40 = vector.extract_strided_slice %33 {offsets = [0, 32], sizes = [8, 32], strides = [1, 1]} : vector<8x128xf32> to vector<8x32xf32>
    %41 = arith.negf %40 : vector<8x32xf32>
    %42 = math.exp %41 : vector<8x32xf32>
    %cst_25 = arith.constant 1.000000e+00 : f32
    %43 = vector.broadcast %cst_25 : f32 to vector<8x32xf32>
    %44 = arith.addf %43, %42 : vector<8x32xf32>
    %45 = arith.divf %43, %44 : vector<8x32xf32>
    %46 = vector.extract_strided_slice %33 {offsets = [0, 64], sizes = [8, 32], strides = [1, 1]} : vector<8x128xf32> to vector<8x32xf32>
    %47 = math.tanh %46 : vector<8x32xf32>
    %48 = vector.extract_strided_slice %33 {offsets = [0, 96], sizes = [8, 32], strides = [1, 1]} : vector<8x128xf32> to vector<8x32xf32>
    %49 = arith.negf %48 : vector<8x32xf32>
    %50 = math.exp %49 : vector<8x32xf32>
    %cst_26 = arith.constant 1.000000e+00 : f32
    %51 = vector.broadcast %cst_26 : f32 to vector<8x32xf32>
    %52 = arith.addf %51, %50 : vector<8x32xf32>
    %53 = arith.divf %51, %52 : vector<8x32xf32>
    %54 = arith.mulf %45, %29 : vector<8x32xf32>
    %55 = arith.mulf %39, %47 : vector<8x32xf32>
    %56 = arith.addf %54, %55 : vector<8x32xf32>
    %57 = math.tanh %56 : vector<8x32xf32>
    %58 = arith.mulf %53, %57 : vector<8x32xf32>
    %c0_27 = arith.constant 0 : index
    %c0_28 = arith.constant 0 : index
    %c0_29 = arith.constant 0 : index
    %59 = vector.load %arg9[%c0_27, %c0_28, %c0_29] : memref<2x8x32xf32, #tpu.memory_space<vmem>>, vector<1x8x32xf32>
    %60 = vector.shape_cast %59 : vector<1x8x32xf32> to vector<8x32xf32>
    %61 = vector.shape_cast %58 : vector<8x32xf32> to vector<1x8x32xf32>
    tpu.vector_store %arg9[%c0_27, %c0_28, %c0_29], %61 {strides = array<i32>} : memref<2x8x32xf32, #tpu.memory_space<vmem>>, vector<1x8x32xf32>,
    %c0_30 = arith.constant 0 : index
    %c0_31 = arith.constant 0 : index
    %c0_32 = arith.constant 0 : index
    %62 = vector.load %arg10[%c0_30, %c0_31, %c0_32] : memref<2x8x32xf32, #tpu.memory_space<vmem>>, vector<1x8x32xf32>
    %63 = vector.shape_cast %62 : vector<1x8x32xf32> to vector<8x32xf32>
    %64 = vector.shape_cast %56 : vector<8x32xf32> to vector<1x8x32xf32>
    tpu.vector_store %arg10[%c0_30, %c0_31, %c0_32], %64 {strides = array<i32>} : memref<2x8x32xf32, #tpu.memory_space<vmem>>, vector<1x8x32xf32>,
    %c1_i32 = arith.constant 1 : i32
    %65 = arith.addi %16, %c1_i32 : i32
    %66 = arith.index_cast %65 : i32 to index
    %c0_33 = arith.constant 0 : index
    %c0_34 = arith.constant 0 : index
    %67 = vector.load %arg3[%66, %c0_33, %c0_34] : memref<4x64x128xf32, #tpu.memory_space<vmem>>, vector<1x64x128xf32>
    %68 = vector.shape_cast %67 : vector<1x64x128xf32> to vector<64x128xf32>
    %c1_i32_35 = arith.constant 1 : i32
    %69 = arith.addi %16, %c1_i32_35 : i32
    %70 = arith.index_cast %69 : i32 to index
    %c0_36 = arith.constant 0 : index
    %c0_37 = arith.constant 0 : index
    %71 = vector.load %arg4[%70, %c0_36, %c0_37] : memref<4x1x128xf32, #tpu.memory_space<vmem>>, vector<1x1x128xf32>
    %72 = vector.shape_cast %71 : vector<1x1x128xf32> to vector<1x128xf32>
    %c1_38 = arith.constant 1 : index
    %c0_39 = arith.constant 0 : index
    %c0_40 = arith.constant 0 : index
    %73 = vector.load %arg9[%c1_38, %c0_39, %c0_40] : memref<2x8x32xf32, #tpu.memory_space<vmem>>, vector<1x8x32xf32>
    %74 = vector.shape_cast %73 : vector<1x8x32xf32> to vector<8x32xf32>
    %c1_41 = arith.constant 1 : index
    %c0_42 = arith.constant 0 : index
    %c0_43 = arith.constant 0 : index
    %75 = vector.load %arg10[%c1_41, %c0_42, %c0_43] : memref<2x8x32xf32, #tpu.memory_space<vmem>>, vector<1x8x32xf32>
    %76 = vector.shape_cast %75 : vector<1x8x32xf32> to vector<8x32xf32>
    %77 = tpu.concatenate %58, %74 in 1 : vector<8x32xf32>, vector<8x32xf32> -> vector<8x64xf32>
    %cst_44 = arith.constant dense<0.000000e+00> : vector<8x128xf32>
    %78 = tpu.matmul %77, %68, %cst_44 {dimension_numbers = #tpu.dot_dimension_numbers<[1], [0], [0], [1], [0, 0, 1, 1], [], []>} : vector<8x64xf32>, vector<64x128xf32>, vector<8x128xf32> -> vector<8x128xf32>
    %79 = vector.broadcast %72 : vector<1x128xf32> to vector<8x128xf32>
    %80 = arith.addf %78, %79 : vector<8x128xf32>
    %81 = vector.extract_strided_slice %80 {offsets = [0, 0], sizes = [8, 32], strides = [1, 1]} : vector<8x128xf32> to vector<8x32xf32>
    %82 = arith.negf %81 : vector<8x32xf32>
    %83 = math.exp %82 : vector<8x32xf32>
    %cst_45 = arith.constant 1.000000e+00 : f32
    %84 = vector.broadcast %cst_45 : f32 to vector<8x32xf32>
    %85 = arith.addf %84, %83 : vector<8x32xf32>
    %86 = arith.divf %84, %85 : vector<8x32xf32>
    %87 = vector.extract_strided_slice %80 {offsets = [0, 32], sizes = [8, 32], strides = [1, 1]} : vector<8x128xf32> to vector<8x32xf32>
    %88 = arith.negf %87 : vector<8x32xf32>
    %89 = math.exp %88 : vector<8x32xf32>
    %cst_46 = arith.constant 1.000000e+00 : f32
    %90 = vector.broadcast %cst_46 : f32 to vector<8x32xf32>
    %91 = arith.addf %90, %89 : vector<8x32xf32>
    %92 = arith.divf %90, %91 : vector<8x32xf32>
    %93 = vector.extract_strided_slice %80 {offsets = [0, 64], sizes = [8, 32], strides = [1, 1]} : vector<8x128xf32> to vector<8x32xf32>
    %94 = math.tanh %93 : vector<8x32xf32>
    %95 = vector.extract_strided_slice %80 {offsets = [0, 96], sizes = [8, 32], strides = [1, 1]} : vector<8x128xf32> to vector<8x32xf32>
    %96 = arith.negf %95 : vector<8x32xf32>
    %97 = math.exp %96 : vector<8x32xf32>
    %cst_47 = arith.constant 1.000000e+00 : f32
    %98 = vector.broadcast %cst_47 : f32 to vector<8x32xf32>
    %99 = arith.addf %98, %97 : vector<8x32xf32>
    %100 = arith.divf %98, %99 : vector<8x32xf32>
    %101 = arith.mulf %92, %76 : vector<8x32xf32>
    %102 = arith.mulf %86, %94 : vector<8x32xf32>
    %103 = arith.addf %101, %102 : vector<8x32xf32>
    %104 = math.tanh %103 : vector<8x32xf32>
    %105 = arith.mulf %100, %104 : vector<8x32xf32>
    %c1_48 = arith.constant 1 : index
    %c0_49 = arith.constant 0 : index
    %c0_50 = arith.constant 0 : index
    %106 = vector.load %arg9[%c1_48, %c0_49, %c0_50] : memref<2x8x32xf32, #tpu.memory_space<vmem>>, vector<1x8x32xf32>
    %107 = vector.shape_cast %106 : vector<1x8x32xf32> to vector<8x32xf32>
    %108 = vector.shape_cast %105 : vector<8x32xf32> to vector<1x8x32xf32>
    tpu.vector_store %arg9[%c1_48, %c0_49, %c0_50], %108 {strides = array<i32>} : memref<2x8x32xf32, #tpu.memory_space<vmem>>, vector<1x8x32xf32>,
    %c1_51 = arith.constant 1 : index
    %c0_52 = arith.constant 0 : index
    %c0_53 = arith.constant 0 : index
    %109 = vector.load %arg10[%c1_51, %c0_52, %c0_53] : memref<2x8x32xf32, #tpu.memory_space<vmem>>, vector<1x8x32xf32>
    %110 = vector.shape_cast %109 : vector<1x8x32xf32> to vector<8x32xf32>
    %111 = vector.shape_cast %103 : vector<8x32xf32> to vector<1x8x32xf32>
    tpu.vector_store %arg10[%c1_51, %c0_52, %c0_53], %111 {strides = array<i32>} : memref<2x8x32xf32, #tpu.memory_space<vmem>>, vector<1x8x32xf32>,
    %112 = arith.extui %0 : i1 to i32
    %c0_i32_54 = arith.constant 0 : i32
    %113 = arith.cmpi ne, %112, %c0_i32_54 : i32
    scf.if %113 {
      %c0_55 = arith.constant 0 : index
      %c0_56 = arith.constant 0 : index
      %114 = vector.load %arg5[%c0_55, %c0_56] : memref<32x128xf32, #tpu.memory_space<vmem>>, vector<32x128xf32>
      %cst_57 = arith.constant dense<0.000000e+00> : vector<8x128xf32>
      %115 = tpu.matmul %105, %114, %cst_57 {dimension_numbers = #tpu.dot_dimension_numbers<[1], [0], [0], [1], [0, 0, 1, 1], [], []>} : vector<8x32xf32>, vector<32x128xf32>, vector<8x128xf32> -> vector<8x128xf32>
      %c0_58 = arith.constant 0 : index
      %c0_59 = arith.constant 0 : index
      %116 = vector.load %arg6[%c0_58, %c0_59] : memref<1x128xf32, #tpu.memory_space<vmem>>, vector<1x128xf32>
      %117 = vector.broadcast %116 : vector<1x128xf32> to vector<8x128xf32>
      %118 = arith.addf %115, %117 : vector<8x128xf32>
      %c0_60 = arith.constant 0 : index
      %c0_61 = arith.constant 0 : index
      %c0_62 = arith.constant 0 : index
      %119 = vector.load %arg7[%c0_60, %c0_61, %c0_62] : memref<1x8x128xf32, #tpu.memory_space<vmem>>, vector<1x8x128xf32>
      %120 = vector.shape_cast %119 : vector<1x8x128xf32> to vector<8x128xf32>
      %121 = vector.shape_cast %118 : vector<8x128xf32> to vector<1x8x128xf32>
      tpu.vector_store %arg7[%c0_60, %c0_61, %c0_62], %121 {strides = array<i32>} : memref<1x8x128xf32, #tpu.memory_space<vmem>>, vector<1x8x128xf32>,
    } else {
    }
    return
  }
  func.func @transform_0(%arg0: i32, %arg1: memref<13x2xi32, #tpu.memory_space<smem>>) -> (i32, i32, i32) {
    %c0_i32 = arith.constant 0 : i32
    %c0_i32_0 = arith.constant 0 : i32
    %c0_i32_1 = arith.constant 0 : i32
    %c0_i32_2 = arith.constant 0 : i32
    return %c0_i32, %c0_i32_0, %c0_i32_1 : i32, i32, i32
  }
  func.func @transform_1(%arg0: i32, %arg1: memref<13x2xi32, #tpu.memory_space<smem>>) -> (i32, i32, i32) {
    %c0_i32 = arith.constant 0 : i32
    %c0_i32_0 = arith.constant 0 : i32
    %c0_i32_1 = arith.constant 0 : i32
    %c0_i32_2 = arith.constant 0 : i32
    return %c0_i32, %c0_i32_0, %c0_i32_1 : i32, i32, i32
  }
  func.func @transform_2(%arg0: i32, %arg1: memref<13x2xi32, #tpu.memory_space<smem>>) -> (i32, i32, i32) {
    %c0_i32 = arith.constant 0 : i32
    %c0_i32_0 = arith.constant 0 : i32
    %c0_i32_1 = arith.constant 0 : i32
    %c0_i32_2 = arith.constant 0 : i32
    return %c0_i32, %c0_i32_0, %c0_i32_1 : i32, i32, i32
  }
  func.func @transform_3(%arg0: i32, %arg1: memref<13x2xi32, #tpu.memory_space<smem>>) -> (i32, i32) {
    %c0_i32 = arith.constant 0 : i32
    %c0_i32_0 = arith.constant 0 : i32
    %c0_i32_1 = arith.constant 0 : i32
    return %c0_i32, %c0_i32_0 : i32, i32
  }
  func.func @transform_4(%arg0: i32, %arg1: memref<13x2xi32, #tpu.memory_space<smem>>) -> (i32, i32) {
    %c0_i32 = arith.constant 0 : i32
    %c0_i32_0 = arith.constant 0 : i32
    %c0_i32_1 = arith.constant 0 : i32
    return %c0_i32, %c0_i32_0 : i32, i32
  }
  func.func @transform_5(%arg0: i32, %arg1: memref<13x2xi32, #tpu.memory_space<smem>>) -> (i32, i32, i32) {
    %c8_i32 = arith.constant 8 : i32
    %0 = arith.subi %arg0, %c8_i32 : i32
    %c1_i32 = arith.constant 1 : i32
    %1 = arith.addi %0, %c1_i32 : i32
    %c0_i32 = arith.constant 0 : i32
    %2 = arith.maxsi %1, %c0_i32 : i32
    %c0_i32_0 = arith.constant 0 : i32
    %c0_i32_1 = arith.constant 0 : i32
    %c0_i32_2 = arith.constant 0 : i32
    return %2, %c0_i32_0, %c0_i32_1 : i32, i32, i32
  }
}

</mosaic_0001>

<llo_original>
// kernel: seq2seq_forward.1
$region0: #{seq2seq_forward.1}
  #allocation0 [shape = 'u32[]', space=smem, size = 0x4, offset = 0x4, fixed_abs, tag = 'smem constant byte address 0x4 - core index']
  #allocation1 [shape = 'u32[144,128]{1,0:T(1,128)}', space=vmem, size = 0x12000, scoped, tag = 'internal scratch']
  #allocation2 [shape = 'f32[8,32]{1,0:T(8,128)}', space=vmem, size = 0x1000, scoped, tag = 'scratch operand']
  #allocation3 [shape = 'f32[2,8,32]{2,1,0:T(8,128)}', space=vmem, size = 0x2000, scoped, tag = 'scratch operand']
  #allocation4 [shape = 'f32[2,8,32]{2,1,0:T(8,128)}', space=vmem, size = 0x2000, scoped, tag = 'scratch operand']
  #allocation5 [shape = 's32[1]{0}', space=sflag, size = 0x4, scoped, tag = 'scoped memory for seq2seq_forward.1']
  #allocation6 [shape = 'u8[8192]{0}', space=smem, size = 0x2000, scoped, tag = 'prefetched SMEM operand 0']
  %s0 = inlined_call_operand.vmem [shape: s32[13,2], index: 0, kind: input, shape index: {}]
  %s1 = inlined_call_operand.hbm [shape: f32[24,1,32], index: 1, kind: input, shape index: {}]
  %s2 = inlined_call_operand.hbm [shape: f32[4,64,128], index: 2, kind: input, shape index: {}]
  %s3 = inlined_call_operand.vmem [shape: f32[4,1,128], index: 3, kind: input, shape index: {}]
  %s4 = inlined_call_operand.vmem [shape: f32[32,128], index: 4, kind: input, shape index: {}]
  %s5 = inlined_call_operand.vmem [shape: f32[1,128], index: 5, kind: input, shape index: {}]
  %s6 = inlined_call_operand.vmem [shape: f32[6,8,128], index: 6, kind: output, shape index: {}]
  %s7 = sld [smem:[#allocation0]]
  $region69: #{seq2seq_forward.1} parent=0
    _
  %s9 = ssub.s32 1, %s7
  %s10 = scalar_select 0, %s9, %s7
  %s11 = sshll.u32 %s0, 4
  %s12 = int_to_ptr.vmem [resolvable:$true] %s11
  %14 = dma.vmem_to_smem %s12, 256, [#allocation6], [#allocation5]
  %15 = dma.done [#allocation5], 256
  %16 = sfence
  $region1: #{seq2seq_forward.1} parent=0
    #allocation7 [shape = 'u8[12288]{0}', space=vmem, size = 0x3000, scoped, tag = 'input window, operand 1, single buffered']
    #allocation8 [shape = 's32[2]{0}', space=sflag, size = 0x8, scoped, tag = 'scoped memory for seq2seq_forward.1']
    #allocation9 [shape = 'u8[131072]{0}', space=vmem, size = 0x20000, scoped, tag = 'input window, operand 2, single buffered']
    #allocation10 [shape = 's32[1]{0}', space=sflag, size = 0x4, scoped, tag = 'scoped memory for seq2seq_forward.1']
    %17 = vsyncpa [#allocation8], 0
    %18 = vsyncpa [#allocation10], 0
    loop: start=0, step=1, limit=15
    $region2: #{seq2seq_forward.1} parent=1 // loop_pre_header
      _
    $region3: #{seq2seq_forward.1} parent=1 // loop_header
      %s20 = sphi 0, %s24
      %p21 = scmp.ge.s32.totalorder %s20, 15
      %s28 = sphi 0, %s28
      %s30 = sphi 0, %s28
      %s31 = sphi 0, %s30
      %s45 = sphi 0, %s31
      %s49 = sphi 0, %s49
      %s51 = sphi 0, %s49
      %s52 = sphi 0, %s51
      %s66 = sphi 0, %s52
      %s70 = sphi 0, %s70
      %s72 = sphi 0, %s70
      %s73 = sphi 0, %s72
      %s87 = sphi 0, %s73
      %s91 = sphi 0, %s91
      %s93 = sphi 0, %s91
      %s94 = sphi 0, %s93
      %s108 = sphi 0, %s94
      %s112 = sphi 0, %s112
      %s114 = sphi 0, %s112
      %s115 = sphi 0, %s114
      %s129 = sphi 0, %s115
      %s141 = sphi 0, %s143
      %s144 = sphi 0, %s141
      %s145 = sphi 0, %s144
      %s161 = sphi 0, %s145
    $region4: #{seq2seq_forward.1} parent=1 // loop_header_branch
      %23 = sbr.rel (%p21) target = $region8
    $region5: #{seq2seq_forward.1} parent=1 // loop_body
      %s25 = ssub.s32 %s20, 1
      %s26 = ssub.s32 %s20, 2
      %s27 = sadd.s32 %s20, 1
      %s29 = sadd.s32 %s28, 1
      %p32 = scmp.eq.s32.totalorder %s20, 12
      %p33 = scmp.ne.s32.totalorder %s28, %s30
      %p34 = scmp.eq.s32.totalorder %s20, 0
      %p35 = por %p33, %p34
      %p36 = scmp.ne.s32.totalorder %s28, %s30
      %p37 = scmp.eq.s32.totalorder %s25, 12
      %p38 = por %p36, %p37
      %p39 = scmp.ne.s32.totalorder %s30, %s31
      %p40 = scmp.eq.s32.totalorder %s25, 0
      %p41 = por %p39, %p40
      %p42 = scmp.ne.s32.totalorder %s30, %s31
      %p43 = scmp.eq.s32.totalorder %s26, 12
      %p44 = por %p42, %p43
      %p46 = scmp.ne.s32.totalorder %s31, %s45
      %p47 = scmp.eq.s32.totalorder %s26, 0
      %p48 = por %p46, %p47
      %s50 = sadd.s32 %s49, 1
      %p53 = scmp.eq.s32.totalorder %s20, 12
      %p54 = scmp.ne.s32.totalorder %s49, %s51
      %p55 = scmp.eq.s32.totalorder %s20, 0
      %p56 = por %p54, %p55
      %p57 = scmp.ne.s32.totalorder %s49, %s51
      %p58 = scmp.eq.s32.totalorder %s25, 12
      %p59 = por %p57, %p58
      %p60 = scmp.ne.s32.totalorder %s51, %s52
      %p61 = scmp.eq.s32.totalorder %s25, 0
      %p62 = por %p60, %p61
      %p63 = scmp.ne.s32.totalorder %s51, %s52
      %p64 = scmp.eq.s32.totalorder %s26, 12
      %p65 = por %p63, %p64
      %p67 = scmp.ne.s32.totalorder %s52, %s66
      %p68 = scmp.eq.s32.totalorder %s26, 0
      %p69 = por %p67, %p68
      %s71 = sadd.s32 %s70, 1
      %p74 = scmp.eq.s32.totalorder %s20, 12
      %p75 = scmp.ne.s32.totalorder %s70, %s72
      %p76 = scmp.eq.s32.totalorder %s20, 0
      %p77 = por %p75, %p76
      %p78 = scmp.ne.s32.totalorder %s70, %s72
      %p79 = scmp.eq.s32.totalorder %s25, 12
      %p80 = por %p78, %p79
      %p81 = scmp.ne.s32.totalorder %s72, %s73
      %p82 = scmp.eq.s32.totalorder %s25, 0
      %p83 = por %p81, %p82
      %p84 = scmp.ne.s32.totalorder %s72, %s73
      %p85 = scmp.eq.s32.totalorder %s26, 12
      %p86 = por %p84, %p85
      %p88 = scmp.ne.s32.totalorder %s73, %s87
      %p89 = scmp.eq.s32.totalorder %s26, 0
      %p90 = por %p88, %p89
      %s92 = sadd.s32 %s91, 1
      %p95 = scmp.eq.s32.totalorder %s20, 12
      %p96 = scmp.ne.s32.totalorder %s91, %s93
      %p97 = scmp.eq.s32.totalorder %s20, 0
      %p98 = por %p96, %p97
      %p99 = scmp.ne.s32.totalorder %s91, %s93
      %p100 = scmp.eq.s32.totalorder %s25, 12
      %p101 = por %p99, %p100
      %p102 = scmp.ne.s32.totalorder %s93, %s94
      %p103 = scmp.eq.s32.totalorder %s25, 0
      %p104 = por %p102, %p103
      %p105 = scmp.ne.s32.totalorder %s93, %s94
      %p106 = scmp.eq.s32.totalorder %s26, 12
      %p107 = por %p105, %p106
      %p109 = scmp.ne.s32.totalorder %s94, %s108
      %p110 = scmp.eq.s32.totalorder %s26, 0
      %p111 = por %p109, %p110
      %s113 = sadd.s32 %s112, 1
      %p116 = scmp.eq.s32.totalorder %s20, 12
      %p117 = scmp.ne.s32.totalorder %s112, %s114
      %p118 = scmp.eq.s32.totalorder %s20, 0
      %p119 = por %p117, %p118
      %p120 = scmp.ne.s32.totalorder %s112, %s114
      %p121 = scmp.eq.s32.totalorder %s25, 12
      %p122 = por %p120, %p121
      %p123 = scmp.ne.s32.totalorder %s114, %s115
      %p124 = scmp.eq.s32.totalorder %s25, 0
      %p125 = por %p123, %p124
      %p126 = scmp.ne.s32.totalorder %s114, %s115
      %p127 = scmp.eq.s32.totalorder %s26, 12
      %p128 = por %p126, %p127
      %p130 = scmp.ne.s32.totalorder %s115, %s129
      %p131 = scmp.eq.s32.totalorder %s26, 0
      %p132 = por %p130, %p131
      %s133 = sadd.s32 %s20, 4294967289
      %p134 = scmp.gt.s32.totalorder %s133, 0
      %s135 = scalar_select %p134, %s133, 0
      %s136 = sadd.s32 %s27, 4294967289
      %p137 = scmp.gt.s32.totalorder %s136, 0
      %s138 = scalar_select %p137, %s136, 0
      %s139 = ssub.s32 %s135, %s138
      %p140 = scmp.eq.s32.totalorder %s139, 0
      %s142 = sadd.s32 %s141, 1
      %s143 = scalar_select %p140, %s141, %s142
      %p146 = pneg %p140
      %p147 = scmp.eq.s32.totalorder %s20, 12
      %p148 = por %p146, %p147
      %p149 = scmp.ne.s32.totalorder %s141, %s144
      %p150 = scmp.eq.s32.totalorder %s20, 0
      %p151 = por %p149, %p150
      %p152 = scmp.ne.s32.totalorder %s141, %s144
      %p153 = scmp.eq.s32.totalorder %s25, 12
      %p154 = por %p152, %p153
      %p155 = scmp.ne.s32.totalorder %s144, %s145
      %p156 = scmp.eq.s32.totalorder %s25, 0
      %p157 = por %p155, %p156
      %p158 = scmp.ne.s32.totalorder %s144, %s145
      %p159 = scmp.eq.s32.totalorder %s26, 12
      %p160 = por %p158, %p159
      %p162 = scmp.ne.s32.totalorder %s145, %s161
      %p163 = scmp.eq.s32.totalorder %s26, 0
      %p164 = por %p162, %p163
      %p165 = scmp.le.s32.totalorder 1, %s20
      %p166 = scmp.lt.s32.totalorder %s20, 14
      %p167 = pnand %p165, %p166
      %p168 = pneg %p167
      // Predicated region
      $region9: #{seq2seq_forward.1} parent=5 // pred_check
        _
      $region10: #{seq2seq_forward.1} parent=5 // pred_check_branch
        %170 = sbr.rel (%p167) target = $region12
      $region11: #{seq2seq_forward.1} parent=5 // pred_region
        %s171 = ssub.s32 %s20, 1
        // Predicated region
        $region13: #{seq2seq_forward.1} parent=11 // pred_check
          %p172 = pneg %p41
        $region14: #{seq2seq_forward.1} parent=11 // pred_check_branch
          %174 = sbr.rel (%p172) target = $region16
        $region15: #{seq2seq_forward.1} parent=11 // pred_region
          %s176 = ssub.s32 384, 384
          %177 = vsyncadd [#allocation8], %s176
          %s178 = sshll.u32 [#allocation7], 4
          %s179 = int_to_ptr.vmem [resolvable:$true] %s178
          %184 = dma.hbm_to_vmem [thread:$0]  %s1, 384, %s179, [#allocation8], 16, 16, 1
        $region16: #{seq2seq_forward.1} parent=11 // pred_fallthru
          _
        // Predicated region
        $region17: #{seq2seq_forward.1} parent=11 // pred_check
          %p185 = pneg %p62
        $region18: #{seq2seq_forward.1} parent=11 // pred_check_branch
          %187 = sbr.rel (%p185) target = $region20
        $region19: #{seq2seq_forward.1} parent=11 // pred_region
          %s189 = ssub.s32 4096, 4096
          %190 = vsyncadd [#allocation10], %s189
          %s191 = sshll.u32 [#allocation9], 4
          %s192 = int_to_ptr.vmem [resolvable:$true] %s191
          %197 = dma.hbm_to_vmem [thread:$0]  %s2, 4096, %s192, [#allocation10], 128, 128, 8
        $region20: #{seq2seq_forward.1} parent=11 // pred_fallthru
          _
        // Predicated region
        $region21: #{seq2seq_forward.1} parent=11 // pred_check
          %p198 = pneg %p83
        $region22: #{seq2seq_forward.1} parent=11 // pred_check_branch
          %200 = sbr.rel (%p198) target = $region24
        $region23: #{seq2seq_forward.1} parent=11 // pred_region
          _
        $region24: #{seq2seq_forward.1} parent=11 // pred_fallthru
          _
        // Predicated region
        $region25: #{seq2seq_forward.1} parent=11 // pred_check
          %p201 = pneg %p104
        $region26: #{seq2seq_forward.1} parent=11 // pred_check_branch
          %203 = sbr.rel (%p201) target = $region28
        $region27: #{seq2seq_forward.1} parent=11 // pred_region
          _
        $region28: #{seq2seq_forward.1} parent=11 // pred_fallthru
          _
        // Predicated region
        $region29: #{seq2seq_forward.1} parent=11 // pred_check
          %p204 = pneg %p125
        $region30: #{seq2seq_forward.1} parent=11 // pred_check_branch
          %206 = sbr.rel (%p204) target = $region32
        $region31: #{seq2seq_forward.1} parent=11 // pred_region
          _
        $region32: #{seq2seq_forward.1} parent=11 // pred_fallthru
          _
      $region12: #{seq2seq_forward.1} parent=5 // pred_fallthru
        _
      %p207 = scmp.lt.s32.totalorder %s20, 13
      // Predicated region
      $region33: #{seq2seq_forward.1} parent=5 // pred_check
        %p208 = pneg %p207
      $region34: #{seq2seq_forward.1} parent=5 // pred_check_branch
        %210 = sbr.rel (%p208) target = $region36
      $region35: #{seq2seq_forward.1} parent=5 // pred_region
        _
      $region36: #{seq2seq_forward.1} parent=5 // pred_fallthru
        _
      %p211 = scmp.le.s32.totalorder 1, %s20
      %p212 = scmp.lt.s32.totalorder %s20, 14
      %p213 = pnand %p211, %p212
      %p214 = pneg %p213
      // Predicated region
      $region37: #{seq2seq_forward.1} parent=5 // pred_check
        _
      $region38: #{seq2seq_forward.1} parent=5 // pred_check_branch
        %216 = sbr.rel (%p213) target = $region40
      $region39: #{seq2seq_forward.1} parent=5 // pred_region
        %s217 = ssub.s32 %s20, 1
        // Predicated region
        $region41: #{seq2seq_forward.1} parent=39 // pred_check
          %p218 = pneg %p41
        $region42: #{seq2seq_forward.1} parent=39 // pred_check_branch
          %220 = sbr.rel (%p218) target = $region44
        $region43: #{seq2seq_forward.1} parent=39 // pred_region
          %221 = dma.done [#allocation8], 384
        $region44: #{seq2seq_forward.1} parent=39 // pred_fallthru
          _
        // Predicated region
        $region45: #{seq2seq_forward.1} parent=39 // pred_check
          %p222 = pneg %p62
        $region46: #{seq2seq_forward.1} parent=39 // pred_check_branch
          %224 = sbr.rel (%p222) target = $region48
        $region47: #{seq2seq_forward.1} parent=39 // pred_region
          %225 = dma.done [#allocation10], 4096
        $region48: #{seq2seq_forward.1} parent=39 // pred_fallthru
          _
        %p226 = pneg %p41
        %p227 = pneg %p38
        %p228 = pneg %p62
        %p229 = pneg %p59
        %p230 = pneg %p83
        %p231 = pneg %p80
        %p232 = pneg %p104
        %p233 = pneg %p101
        %p234 = pneg %p125
        %p235 = pneg %p122
        %p236 = pneg %p157
        %p237 = pneg %p154
        %s238 = sadd.s32 %s25, 4294967289
        %p239 = scmp.gt.s32.totalorder %s238, 0
        %s240 = scalar_select %p239, %s238, 0
        %p241 = scmp.lt.s32.totalorder %s240, 5
        %s242 = scalar_select %p241, %s240, 5
        %s243 = smul.addr %s242, 8
        %s244 = scalar_lea.vmem %s6, %s243
        %s245 = sadd.s32 %s25, 4294967289
        %p246 = scmp.gt.s32.totalorder %s245, 0
        %s247 = scalar_select %p246, %s245, 0
        %p248 = scmp.lt.s32.totalorder %s247, 5
        %s249 = scalar_select %p248, %s247, 5
        %s250 = smul.addr %s249, 8
        %s251 = scalar_lea.vmem %s6, %s250
        %s252 = sadd.s32 %s25, 4294967289
        %p253 = scmp.gt.s32.totalorder %s252, 0
        %s254 = scalar_select %p253, %s252, 0
        %p255 = scmp.ge.s32.totalorder %s25, 8
        %p256 = scmp.eq.s32.totalorder %s25, 0
        // Predicated region
        $region49: #{seq2seq_forward.1} parent=39 // pred_check
          %p257 = pneg %p256
        $region50: #{seq2seq_forward.1} parent=39 // pred_check_branch
          %259 = sbr.rel (%p257) target = $region52
        $region51: #{seq2seq_forward.1} parent=39 // pred_region
          %vm260 = vcmask 261120
          %261 = vst.msk [vmem:[#allocation2] sm:$0xff] %vm260, 0.0
          %262 = vst.msk [vmem:[#allocation3] sm:$0xff] %vm260, 0.0
          %263 = vst.msk [vmem:[#allocation3 + $0x8] sm:$0xff] %vm260, 0.0
          %264 = vst.msk [vmem:[#allocation4] sm:$0xff] %vm260, 0.0
          %265 = vst.msk [vmem:[#allocation4 + $0x8] sm:$0xff] %vm260, 0.0
          %266 = vst [vmem:[%s251] sm:$0xff] 0.0
        $region52: #{seq2seq_forward.1} parent=39 // pred_fallthru
          _
        %s267 = smul.u32 %s25, 128
        %s268 = sld [smem:[#allocation6 + %s267]]
        %s269 = scalar_lea.vmem [#allocation7], %s268
        %v270 = vld [vmem:[%s269] sm:$0x1]
        %vm271 = vcmask 253952
        %272 = vst.msk [vmem:[#allocation2] sm:$0x1] %vm271, %v270
        %s273 = sadd.s32 %s267, 1
        %s274 = sld [smem:[#allocation6 + %s273]]
        %s275 = scalar_lea.vmem [#allocation7], %s274
        %v276 = vld [vmem:[%s275] sm:$0x1]
        %277 = vst.msk [vmem:[#allocation2 + $0x1] sm:$0x1] %vm271, %v276
        %s278 = scalar_select %p255, 2, 0
        %v279 = vld [vmem:[#allocation2] sm:$0xff]
        %s280 = smul.u32 %s278, 64
        %s281 = scalar_lea.vmem [#allocation9], %s280
        %v282 = vld [vmem:[%s281] sm:$0xff]
        %v283 = vld [vmem:[%s281 + $0x8] sm:$0xff]
        %v284 = vld [vmem:[%s281 + $0x10] sm:$0xff]
        %v285 = vld [vmem:[%s281 + $0x18] sm:$0xff]
        %v286 = vld [vmem:[%s281 + $0x20] sm:$0xff]
        %v287 = vld [vmem:[%s281 + $0x28] sm:$0xff]
        %v288 = vld [vmem:[%s281 + $0x30] sm:$0xff]
        %v289 = vld [vmem:[%s281 + $0x38] sm:$0xff]
        %s290 = scalar_lea.vmem %s3, %s278
        %v291 = vld [vmem:[%s290] sm:$0x1]
        %v292 = vld [vmem:[#allocation3] sm:$0xff]
        %v293 = vld [vmem:[#allocation4] sm:$0xff]
        %295 = vrot.lane.b32.xlu0 %v292, 32
        %v296 = vpop.permute.xlu0 %295
        %vm298 = vcmask 261120
        %v299 = vsel %vm298, %v279, %v296
        %v301 = vlaneseq
        %v302 = vshrl.u32 %v301, 7
        %v303 = vsub.s32 0, %v302
        %v304 = vrot.slane %v291, %v303
        %vm306 = vcmask 523264
        %v308 = vsel %vm306, %v299, 0
        %310 = vmatprep.subr.mxu0 0.0
        %311 = vmatpush1.msra.mxu0 %v282
        %312 = vmatprep.subr.mxu0 0.0
        %313 = vmatpush1.msra.mxu0 %v283
        %314 = vmatprep.subr.mxu0 0.0
        %315 = vmatpush1.msra.mxu0 %v284
        %316 = vmatprep.subr.mxu0 0.0
        %317 = vmatpush1.msra.mxu0 %v285
        %318 = vmatprep.subr.mxu0 0.0
        %319 = vmatpush1.msra.mxu0 %v286
        %320 = vmatprep.subr.mxu0 0.0
        %321 = vmatpush1.msra.mxu0 %v287
        %322 = vmatprep.subr.mxu0 0.0
        %323 = vmatpush1.msra.mxu0 %v288
        %324 = vmatprep.subr.mxu0 0.0
        %325 = vmatpush1.msra.mxu0 %v289
        %326 = vmatprep.subr.mxu0 0.0
        %327 = vmatpush1.msra.mxu0 0.0
        %328 = vmatprep.subr.mxu0 0.0
        %329 = vmatpush1.msra.mxu0 0.0
        %330 = vmatprep.subr.mxu0 0.0
        %331 = vmatpush1.msra.mxu0 0.0
        %332 = vmatprep.subr.mxu0 0.0
        %333 = vmatpush1.msra.mxu0 0.0
        %334 = vmatprep.subr.mxu0 0.0
        %335 = vmatpush1.msra.mxu0 0.0
        %336 = vmatprep.subr.mxu0 0.0
        %337 = vmatpush1.msra.mxu0 0.0
        %338 = vmatprep.subr.mxu0 0.0
        %339 = vmatpush1.msra.mxu0 0.0
        %340 = vmatprep.subr.mxu0 0.0
        %341 = vmatpush1.msra.mxu0 0.0
        %342 = vmatprep.subr.mxu0 0.0
        %343 = vmatpush1.msra.mxu0 0.0
        %344 = vmatprep.subr.mxu0 0.0
        %345 = vmatpush1.msra.mxu0 0.0
        %346 = vmatprep.subr.mxu0 0.0
        %347 = vmatpush1.msra.mxu0 0.0
        %348 = vmatprep.subr.mxu0 0.0
        %349 = vmatpush1.msra.mxu0 0.0
        %350 = vmatprep.subr.mxu0 0.0
        %351 = vmatpush1.msra.mxu0 0.0
        %352 = vmatprep.subr.mxu0 0.0
        %353 = vmatpush1.msra.mxu0 0.0
        %354 = vmatprep.subr.mxu0 0.0
        %355 = vmatpush1.msra.mxu0 0.0
        %356 = vmatprep.subr.mxu0 0.0
        %357 = vmatpush1.msra.mxu0 0.0
        %358 = vmatprep.subr.mxu0 0.0
        %359 = vmatpush1.msra.mxu0 0.0
        %360 = vmatprep.subr.mxu0 0.0
        %361 = vmatpush1.msra.mxu0 0.0
        %362 = vmatprep.subr.mxu0 0.0
        %363 = vmatpush1.msra.mxu0 0.0
        %364 = vmatprep.subr.mxu0 0.0
        %365 = vmatpush1.msra.mxu0 0.0
        %366 = vmatprep.subr.mxu0 0.0
        %367 = vmatpush1.msra.mxu0 0.0
        %368 = vmatprep.subr.mxu0 0.0
        %369 = vmatpush1.msra.mxu0 0.0
        %370 = vmatprep.subr.mxu0 0.0
        %371 = vmatpush1.msra.mxu0 0.0
        %372 = vmatprep.subr.mxu0 0.0
        %373 = vmatpush1.msra.mxu0 0.0
        %374 = vmatprep.mubr.f32.mxu0 0.0
        %375 = vmatmul.mubr.f32.gmra.mrb[0].mxu0 %v308
        %v376 = vpop.f32.mrb[0].mxu0
        %v377 = vadd.f32 %v304, %v376
        %v378 = vpop.f32.mrb[0].mxu0
        %379 = vdwg.mxu0
        %v380 = vxor.u32 %v377, 2147483648
        %v381 = vmul.f32 %v380, 1.442695
        %v382 = vpow.pop %v381
        %v383 = vadd.f32 %v382, 1.0
        %v384 = vrcp.pop %v383
        %v385 = vmul.f32 1.0, %v384
        %v386 = vtanh.pop %v377
        %388 = vrot.lane.b32.xlu0 %v293, 32
        %v389 = vpop.permute.xlu0 %388
        %v391 = vmul.f32 %v385, %v389
        %393 = vrot.lane.b32.xlu0 %v386, 64
        %v394 = vpop.permute.xlu0 %393
        %v396 = vmul.f32 %v385, %v394
        %398 = vrot.lane.b32.xlu0 %v396, 32
        %v399 = vpop.permute.xlu0 %398
        %v401 = vadd.f32 %v391, %v399
        %v402 = vtanh.pop %v401
        %404 = vrot.lane.b32.xlu0 %v402, 64
        %v405 = vpop.permute.xlu0 %404
        %v407 = vmul.f32 %v385, %v405
        %409 = vrot.lane.b32.xlu0 %v407, 32
        %v410 = vpop.permute.xlu0 %409
        %412 = vst.msk [vmem:[#allocation3] sm:$0xff] %vm298, %v410
        %414 = vrot.lane.b32.xlu0 %v401, 96
        %v415 = vpop.permute.xlu0 %414
        %417 = vst.msk [vmem:[#allocation4] sm:$0xff] %vm298, %v415
        %s418 = sadd.s32 %s278, 1
        %s419 = smul.u32 %s418, 64
        %s420 = scalar_lea.vmem [#allocation9], %s419
        %v421 = vld [vmem:[%s420] sm:$0xff]
        %v422 = vld [vmem:[%s420 + $0x8] sm:$0xff]
        %v423 = vld [vmem:[%s420 + $0x10] sm:$0xff]
        %v424 = vld [vmem:[%s420 + $0x18] sm:$0xff]
        %v425 = vld [vmem:[%s420 + $0x20] sm:$0xff]
        %v426 = vld [vmem:[%s420 + $0x28] sm:$0xff]
        %v427 = vld [vmem:[%s420 + $0x30] sm:$0xff]
        %v428 = vld [vmem:[%s420 + $0x38] sm:$0xff]
        %s429 = scalar_lea.vmem %s3, %s418
        %v430 = vld [vmem:[%s429] sm:$0x1]
        %s431 = scalar_lea.vmem [#allocation3], 8
        %v432 = vld [vmem:[%s431] sm:$0xff]
        %s433 = scalar_lea.vmem [#allocation4], 8
        %v434 = vld [vmem:[%s433] sm:$0xff]
        %436 = vrot.lane.b32.xlu0 %v432, 32
        %v437 = vpop.permute.xlu0 %436
        %v439 = vsel %vm298, %v410, %v437
        %v441 = vlaneseq
        %v442 = vshrl.u32 %v441, 7
        %v443 = vsub.s32 0, %v442
        %v444 = vrot.slane %v430, %v443
        %v447 = vsel %vm306, %v439, 0
        %449 = vmatprep.subr.mxu0 0.0
        %450 = vmatpush1.msra.mxu0 %v421
        %451 = vmatprep.subr.mxu0 0.0
        %452 = vmatpush1.msra.mxu0 %v422
        %453 = vmatprep.subr.mxu0 0.0
        %454 = vmatpush1.msra.mxu0 %v423
        %455 = vmatprep.subr.mxu0 0.0
        %456 = vmatpush1.msra.mxu0 %v424
        %457 = vmatprep.subr.mxu0 0.0
        %458 = vmatpush1.msra.mxu0 %v425
        %459 = vmatprep.subr.mxu0 0.0
        %460 = vmatpush1.msra.mxu0 %v426
        %461 = vmatprep.subr.mxu0 0.0
        %462 = vmatpush1.msra.mxu0 %v427
        %463 = vmatprep.subr.mxu0 0.0
        %464 = vmatpush1.msra.mxu0 %v428
        %465 = vmatprep.subr.mxu0 0.0
        %466 = vmatpush1.msra.mxu0 0.0
        %467 = vmatprep.subr.mxu0 0.0
        %468 = vmatpush1.msra.mxu0 0.0
        %469 = vmatprep.subr.mxu0 0.0
        %470 = vmatpush1.msra.mxu0 0.0
        %471 = vmatprep.subr.mxu0 0.0
        %472 = vmatpush1.msra.mxu0 0.0
        %473 = vmatprep.subr.mxu0 0.0
        %474 = vmatpush1.msra.mxu0 0.0
        %475 = vmatprep.subr.mxu0 0.0
        %476 = vmatpush1.msra.mxu0 0.0
        %477 = vmatprep.subr.mxu0 0.0
        %478 = vmatpush1.msra.mxu0 0.0
        %479 = vmatprep.subr.mxu0 0.0
        %480 = vmatpush1.msra.mxu0 0.0
        %481 = vmatprep.subr.mxu0 0.0
        %482 = vmatpush1.msra.mxu0 0.0
        %483 = vmatprep.subr.mxu0 0.0
        %484 = vmatpush1.msra.mxu0 0.0
        %485 = vmatprep.subr.mxu0 0.0
        %486 = vmatpush1.msra.mxu0 0.0
        %487 = vmatprep.subr.mxu0 0.0
        %488 = vmatpush1.msra.mxu0 0.0
        %489 = vmatprep.subr.mxu0 0.0
        %490 = vmatpush1.msra.mxu0 0.0
        %491 = vmatprep.subr.mxu0 0.0
        %492 = vmatpush1.msra.mxu0 0.0
        %493 = vmatprep.subr.mxu0 0.0
        %494 = vmatpush1.msra.mxu0 0.0
        %495 = vmatprep.subr.mxu0 0.0
        %496 = vmatpush1.msra.mxu0 0.0
        %497 = vmatprep.subr.mxu0 0.0
        %498 = vmatpush1.msra.mxu0 0.0
        %499 = vmatprep.subr.mxu0 0.0
        %500 = vmatpush1.msra.mxu0 0.0
        %501 = vmatprep.subr.mxu0 0.0
        %502 = vmatpush1.msra.mxu0 0.0
        %503 = vmatprep.subr.mxu0 0.0
        %504 = vmatpush1.msra.mxu0 0.0
        %505 = vmatprep.subr.mxu0 0.0
        %506 = vmatpush1.msra.mxu0 0.0
        %507 = vmatprep.subr.mxu0 0.0
        %508 = vmatpush1.msra.mxu0 0.0
        %509 = vmatprep.subr.mxu0 0.0
        %510 = vmatpush1.msra.mxu0 0.0
        %511 = vmatprep.subr.mxu0 0.0
        %512 = vmatpush1.msra.mxu0 0.0
        %513 = vmatprep.mubr.f32.mxu0 0.0
        %514 = vmatmul.mubr.f32.gmra.mrb[0].mxu0 %v447
        %v515 = vpop.f32.mrb[0].mxu0
        %v516 = vadd.f32 %v444, %v515
        %v517 = vpop.f32.mrb[0].mxu0
        %518 = vdwg.mxu0
        %v519 = vxor.u32 %v516, 2147483648
        %v520 = vmul.f32 %v519, 1.442695
        %v521 = vpow.pop %v520
        %v522 = vadd.f32 %v521, 1.0
        %v523 = vrcp.pop %v522
        %v524 = vmul.f32 1.0, %v523
        %v525 = vtanh.pop %v516
        %527 = vrot.lane.b32.xlu0 %v434, 32
        %v528 = vpop.permute.xlu0 %527
        %v530 = vmul.f32 %v524, %v528
        %532 = vrot.lane.b32.xlu0 %v525, 64
        %v533 = vpop.permute.xlu0 %532
        %v535 = vmul.f32 %v524, %v533
        %537 = vrot.lane.b32.xlu0 %v535, 32
        %v538 = vpop.permute.xlu0 %537
        %v540 = vadd.f32 %v530, %v538
        %v541 = vtanh.pop %v540
        %543 = vrot.lane.b32.xlu0 %v541, 64
        %v544 = vpop.permute.xlu0 %543
        %v546 = vmul.f32 %v524, %v544
        %548 = vrot.lane.b32.xlu0 %v546, 32
        %v549 = vpop.permute.xlu0 %548
        %551 = vst.msk [vmem:[%s431] sm:$0xff] %vm298, %v549
        %553 = vrot.lane.b32.xlu0 %v540, 96
        %v554 = vpop.permute.xlu0 %553
        %556 = vst.msk [vmem:[%s433] sm:$0xff] %vm298, %v554
        // Predicated region
        $region53: #{seq2seq_forward.1} parent=39 // pred_check
          %p557 = pneg %p255
        $region54: #{seq2seq_forward.1} parent=39 // pred_check_branch
          %559 = sbr.rel (%p557) target = $region56
        $region55: #{seq2seq_forward.1} parent=39 // pred_region
          %v560 = vld [vmem:[%s4] sm:$0xff]
          %v561 = vld [vmem:[%s4 + $0x8] sm:$0xff]
          %v562 = vld [vmem:[%s4 + $0x10] sm:$0xff]
          %v563 = vld [vmem:[%s4 + $0x18] sm:$0xff]
          %v564 = vld [vmem:[%s5] sm:$0x1]
          %v566 = vlaneseq
          %v567 = vshrl.u32 %v566, 7
          %v568 = vsub.s32 0, %v567
          %v569 = vrot.slane %v564, %v568
          %v571 = vsel %vm298, %v549, 0
          %573 = vmatprep.subr.mxu0 0.0
          %574 = vmatpush1.msra.mxu0 %v560
          %575 = vmatprep.subr.mxu0 0.0
          %576 = vmatpush1.msra.mxu0 %v561
          %577 = vmatprep.subr.mxu0 0.0
          %578 = vmatpush1.msra.mxu0 %v562
          %579 = vmatprep.subr.mxu0 0.0
          %580 = vmatpush1.msra.mxu0 %v563
          %581 = vmatprep.subr.mxu0 0.0
          %582 = vmatpush1.msra.mxu0 0.0
          %583 = vmatprep.subr.mxu0 0.0
          %584 = vmatpush1.msra.mxu0 0.0
          %585 = vmatprep.subr.mxu0 0.0
          %586 = vmatpush1.msra.mxu0 0.0
          %587 = vmatprep.subr.mxu0 0.0
          %588 = vmatpush1.msra.mxu0 0.0
          %589 = vmatprep.subr.mxu0 0.0
          %590 = vmatpush1.msra.mxu0 0.0
          %591 = vmatprep.subr.mxu0 0.0
          %592 = vmatpush1.msra.mxu0 0.0
          %593 = vmatprep.subr.mxu0 0.0
          %594 = vmatpush1.msra.mxu0 0.0
          %595 = vmatprep.subr.mxu0 0.0
          %596 = vmatpush1.msra.mxu0 0.0
          %597 = vmatprep.subr.mxu0 0.0
          %598 = vmatpush1.msra.mxu0 0.0
          %599 = vmatprep.subr.mxu0 0.0
          %600 = vmatpush1.msra.mxu0 0.0
          %601 = vmatprep.subr.mxu0 0.0
          %602 = vmatpush1.msra.mxu0 0.0
          %603 = vmatprep.subr.mxu0 0.0
          %604 = vmatpush1.msra.mxu0 0.0
          %605 = vmatprep.subr.mxu0 0.0
          %606 = vmatpush1.msra.mxu0 0.0
          %607 = vmatprep.subr.mxu0 0.0
          %608 = vmatpush1.msra.mxu0 0.0
          %609 = vmatprep.subr.mxu0 0.0
          %610 = vmatpush1.msra.mxu0 0.0
          %611 = vmatprep.subr.mxu0 0.0
          %612 = vmatpush1.msra.mxu0 0.0
          %613 = vmatprep.subr.mxu0 0.0
          %614 = vmatpush1.msra.mxu0 0.0
          %615 = vmatprep.subr.mxu0 0.0
          %616 = vmatpush1.msra.mxu0 0.0
          %617 = vmatprep.subr.mxu0 0.0
          %618 = vmatpush1.msra.mxu0 0.0
          %619 = vmatprep.subr.mxu0 0.0
          %620 = vmatpush1.msra.mxu0 0.0
          %621 = vmatprep.subr.mxu0 0.0
          %622 = vmatpush1.msra.mxu0 0.0
          %623 = vmatprep.subr.mxu0 0.0
          %624 = vmatpush1.msra.mxu0 0.0
          %625 = vmatprep.subr.mxu0 0.0
          %626 = vmatpush1.msra.mxu0 0.0
          %627 = vmatprep.subr.mxu0 0.0
          %628 = vmatpush1.msra.mxu0 0.0
          %629 = vmatprep.subr.mxu0 0.0
          %630 = vmatpush1.msra.mxu0 0.0
          %631 = vmatprep.subr.mxu0 0.0
          %632 = vmatpush1.msra.mxu0 0.0
          %633 = vmatprep.subr.mxu0 0.0
          %634 = vmatpush1.msra.mxu0 0.0
          %635 = vmatprep.subr.mxu0 0.0
          %636 = vmatpush1.msra.mxu0 0.0
          %637 = vmatprep.mubr.f32.mxu0 0.0
          %638 = vmatmul.mubr.f32.gmra.mrb[0].mxu0 %v571
          %v639 = vpop.f32.mrb[0].mxu0
          %v640 = vadd.f32 %v569, %v639
          %v641 = vpop.f32.mrb[0].mxu0
          %642 = vdwg.mxu0
          %643 = vst [vmem:[%s251] sm:$0xff] %v640
        $region56: #{seq2seq_forward.1} parent=39 // pred_fallthru
          _
        %s644 = sadd.s32 %s25, 4294967289
        %p645 = scmp.gt.s32.totalorder %s644, 0
        %s646 = scalar_select %p645, %s644, 0
        %p647 = scmp.lt.s32.totalorder %s646, 5
        %s648 = scalar_select %p647, %s646, 5
        %s649 = smul.addr %s648, 8
        %s650 = scalar_lea.vmem %s6, %s649
        // Predicated region
        $region57: #{seq2seq_forward.1} parent=39 // pred_check
          %p651 = pneg %p154
        $region58: #{seq2seq_forward.1} parent=39 // pred_check_branch
          %653 = sbr.rel (%p651) target = $region60
        $region59: #{seq2seq_forward.1} parent=39 // pred_region
          %s654 = sadd.s32 %s25, 4294967289
          %p655 = scmp.gt.s32.totalorder %s654, 0
          %s656 = scalar_select %p655, %s654, 0
        $region60: #{seq2seq_forward.1} parent=39 // pred_fallthru
          _
      $region40: #{seq2seq_forward.1} parent=5 // pred_fallthru
        _
      %p657 = scmp.le.s32.totalorder 2, %s20
      // Predicated region
      $region61: #{seq2seq_forward.1} parent=5 // pred_check
        %p658 = pneg %p657
      $region62: #{seq2seq_forward.1} parent=5 // pred_check_branch
        %660 = sbr.rel (%p658) target = $region64
      $region63: #{seq2seq_forward.1} parent=5 // pred_region
        %s661 = ssub.s32 %s20, 2
        // Predicated region
        $region65: #{seq2seq_forward.1} parent=63 // pred_check
          %p662 = pneg %p160
        $region66: #{seq2seq_forward.1} parent=63 // pred_check_branch
          %664 = sbr.rel (%p662) target = $region68
        $region67: #{seq2seq_forward.1} parent=63 // pred_region
          %s665 = sadd.s32 %s26, 4294967289
          %p666 = scmp.gt.s32.totalorder %s665, 0
          %s667 = scalar_select %p666, %s665, 0
          %p668 = scmp.lt.s32.totalorder %s667, 5
          %s669 = scalar_select %p668, %s667, 5
          %s670 = smul.addr %s669, 8
          %s671 = scalar_lea.vmem %s6, %s670
        $region68: #{seq2seq_forward.1} parent=63 // pred_fallthru
          _
      $region64: #{seq2seq_forward.1} parent=5 // pred_fallthru
        _
    $region6: #{seq2seq_forward.1} parent=1 // loop_footer
      %s24 = sadd.s32 1, %s20
    $region7: #{seq2seq_forward.1} parent=1 // loop_footer_branch
      %19 = sbr.rel target = $region3
    $region8: #{seq2seq_forward.1} parent=1 // loop_exit
      _
    %672 = vsyncpa [#allocation8], 1
    %s673 = scalar_lea.sflag [#allocation8], 1
    %674 = vsyncpa %s673, 1
    %675 = vsyncpa [#allocation10], 1

</llo_original>
